<compile_context>
chip_gen: v7x
topology: tpu7x:2x2x1
jax: 0.10.0
libtpu: 0.0.40
codegen_flags: <defaults>
</compile_context>

<pallas_src>
import math

import jax
import jax.numpy as jnp
from jax.experimental import pallas as pl
from jax.experimental.pallas import tpu as pltpu


def _round_up(x: int, m: int) -> int:
    return ((x + m - 1) // m) * m


def _inner_product_decoder_kernel(xi_ref, xj_ref, o_ref):
    # xi_ref: (TM, D) row-block of embeddings, xj_ref: (TN, D) column-block.
    # Contract both on the D axis (no transpose) -> MXU, f32 accumulation.
    s = jax.lax.dot_general(
        xi_ref[...],
        xj_ref[...],
        dimension_numbers=(((1,), (1,)), ((), ())),
        preferred_element_type=jnp.float32,
    )
    # sigmoid: exp lands on the EUP slot; effectively free under MXU/HBM bound.
    o_ref[...] = jax.nn.sigmoid(s).astype(o_ref.dtype)


def inner_product_decoder(
    inp: jax.Array,
    *,
    block_rows: int = 256,
    block_cols: int = 512,
) -> jax.Array:
    """sigmoid(inp @ inp.T) via a Pallas TPU kernel.

    dropout p=0.0 (eval semantics) => identity, so it is omitted.
    """
    n, d = inp.shape
    out_dtype = inp.dtype

    # Clamp tiles for small problems; keep them multiples of (8, 128) so the
    # output stays lane-dense and the MXU rows are well utilized.
    tm = min(block_rows, _round_up(n, 128))
    tn = min(block_cols, _round_up(n, 128))

    # Padded extent must be divisible by both tile sizes.
    n_pad = _round_up(n, math.lcm(tm, tn))
    if n_pad != n:
        x = jnp.pad(inp, ((0, n_pad - n), (0, 0)))
    else:
        x = inp

    grid = (n_pad // tm, n_pad // tn)

    out_padded = pl.pallas_call(
        _inner_product_decoder_kernel,
        out_shape=jax.ShapeDtypeStruct((n_pad, n_pad), out_dtype),
        grid_spec=pltpu.PrefetchScalarGridSpec(
            num_scalar_prefetch=0,
            grid=grid,
            in_specs=[
                # (TM, D) row block of the embeddings (LHS)
                pl.BlockSpec((tm, d), lambda i, j: (i, 0)),
                # (TN, D) column block of the embeddings (RHS, contracted on D)
                pl.BlockSpec((tn, d), lambda i, j: (j, 0)),
            ],
            out_specs=pl.BlockSpec((tm, tn), lambda i, j: (i, j)),
        ),
        compiler_params=pltpu.CompilerParams(
            # Both grid axes are independent -> megacore can shard either.
            dimension_semantics=("parallel", "parallel"),
        ),
    )(x, x)

    if n_pad != n:
        return out_padded[:n, :n]
    return out_padded


def inner_product_decoder_ref(inp: jax.Array) -> jax.Array:
    return jax.nn.sigmoid(inp @ inp.T)


if __name__ == "__main__":
    key = jax.random.PRNGKey(0)
    N, D = 16, 32  # small demo: 16 nodes, 32-dim embeddings
    inp = jax.random.normal(key, (N, D), dtype=jnp.float32)

    out = inner_product_decoder(inp)
    out = jax.block_until_ready(out)

    ref = inner_product_decoder_ref(inp)
    assert out.shape == (N, N)
    assert jnp.allclose(out, ref, atol=1e-5, rtol=1e-5), "mismatch vs reference"

    # Also sanity-check a non-tile-aligned, multi-tile size on the same code path.
    N2, D2 = 200, 48
    inp2 = jax.random.normal(jax.random.PRNGKey(1), (N2, D2), dtype=jnp.float32)
    out2 = jax.block_until_ready(
        inner_product_decoder(inp2, block_rows=128, block_cols=128)
    )
    ref2 = inner_product_decoder_ref(inp2)
    assert out2.shape == (N2, N2)
    assert jnp.allclose(out2, ref2, atol=1e-5, rtol=1e-5), "mismatch vs reference (padded)"

    print("KERNEL_OK")
</pallas_src>

<mosaic_0001>
module attributes {stable_mosaic.version = 11 : i64} {
  func.func @_inner_product_decoder_kernel(%arg0: i32, %arg1: i32, %arg2: memref<128x32xf32, #tpu.memory_space<vmem>>, %arg3: memref<128x32xf32, #tpu.memory_space<vmem>>, %arg4: memref<128x128xf32, #tpu.memory_space<vmem>>) attributes {dimension_semantics = [#tpu.dimension_semantics<parallel>, #tpu.dimension_semantics<parallel>], iteration_bounds = array<i64: 1, 1>, scalar_prefetch = 0 : i64, scratch_operands = 0 : i64, tpu.core_type = #tpu.core_type<tc>, window_params = [{transform_indices = @transform_0, window_bounds = array<i64: 128, 32>}, {transform_indices = @transform_1, window_bounds = array<i64: 128, 32>}, {transform_indices = @transform_2, window_bounds = array<i64: 128, 128>}]} {
    %c0 = arith.constant 0 : index
    %c0_0 = arith.constant 0 : index
    %0 = vector.load %arg2[%c0, %c0_0] : memref<128x32xf32, #tpu.memory_space<vmem>>, vector<128x32xf32>
    %c0_1 = arith.constant 0 : index
    %c0_2 = arith.constant 0 : index
    %1 = vector.load %arg3[%c0_1, %c0_2] : memref<128x32xf32, #tpu.memory_space<vmem>>, vector<128x32xf32>
    %cst = arith.constant dense<0.000000e+00> : vector<128x128xf32>
    %2 = tpu.matmul %0, %1, %cst {dimension_numbers = #tpu.dot_dimension_numbers<[1], [1], [0], [0], [0, 0, 1, 0], [], []>} : vector<128x32xf32>, vector<128x32xf32>, vector<128x128xf32> -> vector<128x128xf32>
    %3 = arith.negf %2 : vector<128x128xf32>
    %4 = math.exp %3 : vector<128x128xf32>
    %cst_3 = arith.constant 1.000000e+00 : f32
    %5 = vector.broadcast %cst_3 : f32 to vector<128x128xf32>
    %6 = arith.addf %5, %4 : vector<128x128xf32>
    %7 = arith.divf %5, %6 : vector<128x128xf32>
    %c0_4 = arith.constant 0 : index
    %c0_5 = arith.constant 0 : index
    %8 = vector.load %arg4[%c0_4, %c0_5] : memref<128x128xf32, #tpu.memory_space<vmem>>, vector<128x128xf32>
    tpu.vector_store %arg4[%c0_4, %c0_5], %7 {strides = array<i32>} : memref<128x128xf32, #tpu.memory_space<vmem>>, vector<128x128xf32>,
    return
  }
  func.func @transform_0(%arg0: i32, %arg1: i32) -> (i32, i32) {
    %c0_i32 = arith.constant 0 : i32
    %c0_i32_0 = arith.constant 0 : i32
    return %arg0, %c0_i32 : i32, i32
  }
  func.func @transform_1(%arg0: i32, %arg1: i32) -> (i32, i32) {
    %c0_i32 = arith.constant 0 : i32
    %c0_i32_0 = arith.constant 0 : i32
    return %arg1, %c0_i32 : i32, i32
  }
  func.func @transform_2(%arg0: i32, %arg1: i32) -> (i32, i32) {
    %c0_i32 = arith.constant 0 : i32
    return %arg0, %arg1 : i32, i32
  }
}

</mosaic_0001>

<llo_original>
// kernel: tpu_custom_call.1
$region0: #{tpu_custom_call.1}
  #allocation0 [shape = 'u32[]', space=smem, size = 0x4, offset = 0x4, fixed_abs, tag = 'smem constant byte address 0x4 - core index']
  #allocation1 [shape = 'u32[144,128]{1,0:T(1,128)}', space=vmem, size = 0x12000, scoped, tag = 'internal scratch']
  %s0 = inlined_call_operand.vmem [shape: f32[128,32], index: 0, kind: input, shape index: {}]
  %s1 = inlined_call_operand.vmem [shape: f32[128,32], index: 1, kind: input, shape index: {}]
  %s2 = inlined_call_operand.hbm [shape: f32[128,128], index: 2, kind: output, shape index: {}]
  %s3 = sld [smem:[#allocation0]]
  $region18: #{tpu_custom_call.1} parent=0
    _
  %s5 = ssub.s32 1, %s3
  %s6 = scalar_select 0, %s5, %s3
  $region1: #{tpu_custom_call.1} parent=0
    #allocation2 [shape = 'u8[65536]{0}', space=vmem, size = 0x10000, scoped, tag = 'output window, operand 0, single buffered']
    #allocation3 [shape = 's32[1]{0}', space=sflag, size = 0x4, scoped, tag = 'scoped memory for tpu_custom_call.1']
    %7 = vsyncpa [#allocation3], 0
    // Predicated region
    $region2: #{tpu_custom_call.1} parent=1 // pred_check
      _
    $region3: #{tpu_custom_call.1} parent=1 // pred_check_branch
      %9 = sbr.rel (0) target = $region5
    $region4: #{tpu_custom_call.1} parent=1 // pred_region
      _
    $region5: #{tpu_custom_call.1} parent=1 // pred_fallthru
      _
    // Predicated region
    $region6: #{tpu_custom_call.1} parent=1 // pred_check
      _
    $region7: #{tpu_custom_call.1} parent=1 // pred_check_branch
      %11 = sbr.rel (0) target = $region9
    $region8: #{tpu_custom_call.1} parent=1 // pred_region
      _
    $region9: #{tpu_custom_call.1} parent=1 // pred_fallthru
      _
    %v12 = vld [vmem:[%s0] sm:$0xff]
    %v13 = vld [vmem:[%s0 + $0x8] sm:$0xff]
    %v14 = vld [vmem:[%s0 + $0x10] sm:$0xff]
    %v15 = vld [vmem:[%s0 + $0x18] sm:$0xff]
    %v16 = vld [vmem:[%s0 + $0x20] sm:$0xff]
    %v17 = vld [vmem:[%s0 + $0x28] sm:$0xff]
    %v18 = vld [vmem:[%s0 + $0x30] sm:$0xff]
    %v19 = vld [vmem:[%s0 + $0x38] sm:$0xff]
    %v20 = vld [vmem:[%s0 + $0x40] sm:$0xff]
    %v21 = vld [vmem:[%s0 + $0x48] sm:$0xff]
    %v22 = vld [vmem:[%s0 + $0x50] sm:$0xff]
    %v23 = vld [vmem:[%s0 + $0x58] sm:$0xff]
    %v24 = vld [vmem:[%s0 + $0x60] sm:$0xff]
    %v25 = vld [vmem:[%s0 + $0x68] sm:$0xff]
    %v26 = vld [vmem:[%s0 + $0x70] sm:$0xff]
    %v27 = vld [vmem:[%s0 + $0x78] sm:$0xff]
    %v28 = vld [vmem:[%s1] sm:$0xff]
    %v29 = vld [vmem:[%s1 + $0x8] sm:$0xff]
    %v30 = vld [vmem:[%s1 + $0x10] sm:$0xff]
    %v31 = vld [vmem:[%s1 + $0x18] sm:$0xff]
    %v32 = vld [vmem:[%s1 + $0x20] sm:$0xff]
    %v33 = vld [vmem:[%s1 + $0x28] sm:$0xff]
    %v34 = vld [vmem:[%s1 + $0x30] sm:$0xff]
    %v35 = vld [vmem:[%s1 + $0x38] sm:$0xff]
    %v36 = vld [vmem:[%s1 + $0x40] sm:$0xff]
    %v37 = vld [vmem:[%s1 + $0x48] sm:$0xff]
    %v38 = vld [vmem:[%s1 + $0x50] sm:$0xff]
    %v39 = vld [vmem:[%s1 + $0x58] sm:$0xff]
    %v40 = vld [vmem:[%s1 + $0x60] sm:$0xff]
    %v41 = vld [vmem:[%s1 + $0x68] sm:$0xff]
    %v42 = vld [vmem:[%s1 + $0x70] sm:$0xff]
    %v43 = vld [vmem:[%s1 + $0x78] sm:$0xff]
    %vm44 = vcmask 261120
    %v46 = vsel %vm44, %v12, 0
    %v49 = vsel %vm44, %v13, 0
    %v52 = vsel %vm44, %v14, 0
    %v55 = vsel %vm44, %v15, 0
    %v58 = vsel %vm44, %v16, 0
    %v61 = vsel %vm44, %v17, 0
    %v64 = vsel %vm44, %v18, 0
    %v67 = vsel %vm44, %v19, 0
    %v70 = vsel %vm44, %v20, 0
    %v73 = vsel %vm44, %v21, 0
    %v76 = vsel %vm44, %v22, 0
    %v79 = vsel %vm44, %v23, 0
    %v82 = vsel %vm44, %v24, 0
    %v85 = vsel %vm44, %v25, 0
    %v88 = vsel %vm44, %v26, 0
    %v91 = vsel %vm44, %v27, 0
    %v94 = vsel %vm44, %v28, 0
    %v97 = vsel %vm44, %v29, 0
    %v100 = vsel %vm44, %v30, 0
    %v103 = vsel %vm44, %v31, 0
    %v106 = vsel %vm44, %v32, 0
    %v109 = vsel %vm44, %v33, 0
    %v112 = vsel %vm44, %v34, 0
    %v115 = vsel %vm44, %v35, 0
    %v118 = vsel %vm44, %v36, 0
    %v121 = vsel %vm44, %v37, 0
    %v124 = vsel %vm44, %v38, 0
    %v127 = vsel %vm44, %v39, 0
    %v130 = vsel %vm44, %v40, 0
    %v133 = vsel %vm44, %v41, 0
    %v136 = vsel %vm44, %v42, 0
    %v139 = vsel %vm44, %v43, 0
    %141 = vmatprep.subr.mxu0 0.0
    %142 = vmatpush1.xpose.msra.mxu0 %v94
    %143 = vmatprep.subr.mxu0 0.0
    %144 = vmatpush1.xpose.msra.mxu0 %v97
    %145 = vmatprep.subr.mxu0 0.0
    %146 = vmatpush1.xpose.msra.mxu0 %v100
    %147 = vmatprep.subr.mxu0 0.0
    %148 = vmatpush1.xpose.msra.mxu0 %v103
    %149 = vmatprep.subr.mxu0 0.0
    %150 = vmatpush1.xpose.msra.mxu0 %v106
    %151 = vmatprep.subr.mxu0 0.0
    %152 = vmatpush1.xpose.msra.mxu0 %v109
    %153 = vmatprep.subr.mxu0 0.0
    %154 = vmatpush1.xpose.msra.mxu0 %v112
    %155 = vmatprep.subr.mxu0 0.0
    %156 = vmatpush1.xpose.msra.mxu0 %v115
    %157 = vmatprep.subr.mxu0 0.0
    %158 = vmatpush1.xpose.msra.mxu0 %v118
    %159 = vmatprep.subr.mxu0 0.0
    %160 = vmatpush1.xpose.msra.mxu0 %v121
    %161 = vmatprep.subr.mxu0 0.0
    %162 = vmatpush1.xpose.msra.mxu0 %v124
    %163 = vmatprep.subr.mxu0 0.0
    %164 = vmatpush1.xpose.msra.mxu0 %v127
    %165 = vmatprep.subr.mxu0 0.0
    %166 = vmatpush1.xpose.msra.mxu0 %v130
    %167 = vmatprep.subr.mxu0 0.0
    %168 = vmatpush1.xpose.msra.mxu0 %v133
    %169 = vmatprep.subr.mxu0 0.0
    %170 = vmatpush1.xpose.msra.mxu0 %v136
    %171 = vmatprep.subr.mxu0 0.0
    %172 = vmatpush1.xpose.msra.mxu0 %v139
    %173 = vmatprep.subr.mxu0 0.0
    %174 = vmatpush1.xpose.msra.mxu0 0.0
    %175 = vmatprep.subr.mxu0 0.0
    %176 = vmatpush1.xpose.msra.mxu0 0.0
    %177 = vmatprep.subr.mxu0 0.0
    %178 = vmatpush1.xpose.msra.mxu0 0.0
    %179 = vmatprep.subr.mxu0 0.0
    %180 = vmatpush1.xpose.msra.mxu0 0.0
    %181 = vmatprep.subr.mxu0 0.0
    %182 = vmatpush1.xpose.msra.mxu0 0.0
    %183 = vmatprep.subr.mxu0 0.0
    %184 = vmatpush1.xpose.msra.mxu0 0.0
    %185 = vmatprep.subr.mxu0 0.0
    %186 = vmatpush1.xpose.msra.mxu0 0.0
    %187 = vmatprep.subr.mxu0 0.0
    %188 = vmatpush1.xpose.msra.mxu0 0.0
    %189 = vmatprep.subr.mxu0 0.0
    %190 = vmatpush1.xpose.msra.mxu0 0.0
    %191 = vmatprep.subr.mxu0 0.0
    %192 = vmatpush1.xpose.msra.mxu0 0.0
    %193 = vmatprep.subr.mxu0 0.0
    %194 = vmatpush1.xpose.msra.mxu0 0.0
    %195 = vmatprep.subr.mxu0 0.0
    %196 = vmatpush1.xpose.msra.mxu0 0.0
    %197 = vmatprep.subr.mxu0 0.0
    %198 = vmatpush1.xpose.msra.mxu0 0.0
    %199 = vmatprep.subr.mxu0 0.0
    %200 = vmatpush1.xpose.msra.mxu0 0.0
    %201 = vmatprep.subr.mxu0 0.0
    %202 = vmatpush1.xpose.msra.mxu0 0.0
    %203 = vmatprep.subr.mxu0 0.0
    %204 = vmatpush1.xpose.msra.mxu0 0.0
    %205 = vmatprep.mubr.f32.mxu0 0.0
    %206 = vmatmul.mubr.f32.gmra.mrb[0].mxu0 %v46
    %v207 = vpop.f32.mrb[0].mxu0
    %v208 = vadd.f32 0.0, %v207
    %v209 = vpop.f32.mrb[0].mxu0
    %210 = vmatprep.mubr.f32.mxu0 0.0
    %211 = vmatmul.mubr.f32.gmra.mrb[0].mxu0 %v49
    %v212 = vpop.f32.mrb[0].mxu0
    %v213 = vadd.f32 0.0, %v212
    %v214 = vpop.f32.mrb[0].mxu0
    %215 = vmatprep.mubr.f32.mxu0 0.0
    %216 = vmatmul.mubr.f32.gmra.mrb[0].mxu0 %v52
    %v217 = vpop.f32.mrb[0].mxu0
    %v218 = vadd.f32 0.0, %v217
    %v219 = vpop.f32.mrb[0].mxu0
    %220 = vmatprep.mubr.f32.mxu0 0.0
    %221 = vmatmul.mubr.f32.gmra.mrb[0].mxu0 %v55
    %v222 = vpop.f32.mrb[0].mxu0
    %v223 = vadd.f32 0.0, %v222
    %v224 = vpop.f32.mrb[0].mxu0
    %225 = vmatprep.mubr.f32.mxu0 0.0
    %226 = vmatmul.mubr.f32.gmra.mrb[0].mxu0 %v58
    %v227 = vpop.f32.mrb[0].mxu0
    %v228 = vadd.f32 0.0, %v227
    %v229 = vpop.f32.mrb[0].mxu0
    %230 = vmatprep.mubr.f32.mxu0 0.0
    %231 = vmatmul.mubr.f32.gmra.mrb[0].mxu0 %v61
    %v232 = vpop.f32.mrb[0].mxu0
    %v233 = vadd.f32 0.0, %v232
    %v234 = vpop.f32.mrb[0].mxu0
    %235 = vmatprep.mubr.f32.mxu0 0.0
    %236 = vmatmul.mubr.f32.gmra.mrb[0].mxu0 %v64
    %v237 = vpop.f32.mrb[0].mxu0
    %v238 = vadd.f32 0.0, %v237
    %v239 = vpop.f32.mrb[0].mxu0
    %240 = vmatprep.mubr.f32.mxu0 0.0
    %241 = vmatmul.mubr.f32.gmra.mrb[0].mxu0 %v67
    %v242 = vpop.f32.mrb[0].mxu0
    %v243 = vadd.f32 0.0, %v242
    %v244 = vpop.f32.mrb[0].mxu0
    %245 = vmatprep.mubr.f32.mxu0 0.0
    %246 = vmatmul.mubr.f32.gmra.mrb[0].mxu0 %v70
    %v247 = vpop.f32.mrb[0].mxu0
    %v248 = vadd.f32 0.0, %v247
    %v249 = vpop.f32.mrb[0].mxu0
    %250 = vmatprep.mubr.f32.mxu0 0.0
    %251 = vmatmul.mubr.f32.gmra.mrb[0].mxu0 %v73
    %v252 = vpop.f32.mrb[0].mxu0
    %v253 = vadd.f32 0.0, %v252
    %v254 = vpop.f32.mrb[0].mxu0
    %255 = vmatprep.mubr.f32.mxu0 0.0
    %256 = vmatmul.mubr.f32.gmra.mrb[0].mxu0 %v76
    %v257 = vpop.f32.mrb[0].mxu0
    %v258 = vadd.f32 0.0, %v257
    %v259 = vpop.f32.mrb[0].mxu0
    %260 = vmatprep.mubr.f32.mxu0 0.0
    %261 = vmatmul.mubr.f32.gmra.mrb[0].mxu0 %v79
    %v262 = vpop.f32.mrb[0].mxu0
    %v263 = vadd.f32 0.0, %v262
    %v264 = vpop.f32.mrb[0].mxu0
    %265 = vmatprep.mubr.f32.mxu0 0.0
    %266 = vmatmul.mubr.f32.gmra.mrb[0].mxu0 %v82
    %v267 = vpop.f32.mrb[0].mxu0
    %v268 = vadd.f32 0.0, %v267
    %v269 = vpop.f32.mrb[0].mxu0
    %270 = vmatprep.mubr.f32.mxu0 0.0
    %271 = vmatmul.mubr.f32.gmra.mrb[0].mxu0 %v85
    %v272 = vpop.f32.mrb[0].mxu0
    %v273 = vadd.f32 0.0, %v272
    %v274 = vpop.f32.mrb[0].mxu0
    %275 = vmatprep.mubr.f32.mxu0 0.0
    %276 = vmatmul.mubr.f32.gmra.mrb[0].mxu0 %v88
    %v277 = vpop.f32.mrb[0].mxu0
    %v278 = vadd.f32 0.0, %v277
    %v279 = vpop.f32.mrb[0].mxu0
    %280 = vmatprep.mubr.f32.mxu0 0.0
    %281 = vmatmul.mubr.f32.gmra.mrb[0].mxu0 %v91
    %v282 = vpop.f32.mrb[0].mxu0
    %v283 = vadd.f32 0.0, %v282
    %v284 = vpop.f32.mrb[0].mxu0
    %285 = vdwg.mxu0
    %v286 = vxor.u32 %v208, 2147483648
    %v287 = vxor.u32 %v213, 2147483648
    %v288 = vxor.u32 %v218, 2147483648
    %v289 = vxor.u32 %v223, 2147483648
    %v290 = vxor.u32 %v228, 2147483648
    %v291 = vxor.u32 %v233, 2147483648
    %v292 = vxor.u32 %v238, 2147483648
    %v293 = vxor.u32 %v243, 2147483648
    %v294 = vxor.u32 %v248, 2147483648
    %v295 = vxor.u32 %v253, 2147483648
    %v296 = vxor.u32 %v258, 2147483648
    %v297 = vxor.u32 %v263, 2147483648
    %v298 = vxor.u32 %v268, 2147483648
    %v299 = vxor.u32 %v273, 2147483648
    %v300 = vxor.u32 %v278, 2147483648
    %v301 = vxor.u32 %v283, 2147483648
    %v302 = vmul.f32 %v286, 1.442695
    %v303 = vpow.pop %v302
    %v304 = vmul.f32 %v287, 1.442695
    %v305 = vpow.pop %v304
    %v306 = vmul.f32 %v288, 1.442695
    %v307 = vpow.pop %v306
    %v308 = vmul.f32 %v289, 1.442695
    %v309 = vpow.pop %v308
    %v310 = vmul.f32 %v290, 1.442695
    %v311 = vpow.pop %v310
    %v312 = vmul.f32 %v291, 1.442695
    %v313 = vpow.pop %v312
    %v314 = vmul.f32 %v292, 1.442695
    %v315 = vpow.pop %v314
    %v316 = vmul.f32 %v293, 1.442695
    %v317 = vpow.pop %v316
    %v318 = vmul.f32 %v294, 1.442695
    %v319 = vpow.pop %v318
    %v320 = vmul.f32 %v295, 1.442695
    %v321 = vpow.pop %v320
    %v322 = vmul.f32 %v296, 1.442695
    %v323 = vpow.pop %v322
    %v324 = vmul.f32 %v297, 1.442695
    %v325 = vpow.pop %v324
    %v326 = vmul.f32 %v298, 1.442695
    %v327 = vpow.pop %v326
    %v328 = vmul.f32 %v299, 1.442695
    %v329 = vpow.pop %v328
    %v330 = vmul.f32 %v300, 1.442695
    %v331 = vpow.pop %v330
    %v332 = vmul.f32 %v301, 1.442695
    %v333 = vpow.pop %v332
    %v334 = vadd.f32 %v303, 1.0
    %v335 = vadd.f32 %v305, 1.0
    %v336 = vadd.f32 %v307, 1.0
    %v337 = vadd.f32 %v309, 1.0
    %v338 = vadd.f32 %v311, 1.0
    %v339 = vadd.f32 %v313, 1.0
    %v340 = vadd.f32 %v315, 1.0
    %v341 = vadd.f32 %v317, 1.0
    %v342 = vadd.f32 %v319, 1.0
    %v343 = vadd.f32 %v321, 1.0
    %v344 = vadd.f32 %v323, 1.0
    %v345 = vadd.f32 %v325, 1.0
    %v346 = vadd.f32 %v327, 1.0
    %v347 = vadd.f32 %v329, 1.0
    %v348 = vadd.f32 %v331, 1.0
    %v349 = vadd.f32 %v333, 1.0
    %v350 = vrcp.pop %v334
    %v351 = vmul.f32 1.0, %v350
    %v352 = vrcp.pop %v335
    %v353 = vmul.f32 1.0, %v352
    %v354 = vrcp.pop %v336
    %v355 = vmul.f32 1.0, %v354
    %v356 = vrcp.pop %v337
    %v357 = vmul.f32 1.0, %v356
    %v358 = vrcp.pop %v338
    %v359 = vmul.f32 1.0, %v358
    %v360 = vrcp.pop %v339
    %v361 = vmul.f32 1.0, %v360
    %v362 = vrcp.pop %v340
    %v363 = vmul.f32 1.0, %v362
    %v364 = vrcp.pop %v341
    %v365 = vmul.f32 1.0, %v364
    %v366 = vrcp.pop %v342
    %v367 = vmul.f32 1.0, %v366
    %v368 = vrcp.pop %v343
    %v369 = vmul.f32 1.0, %v368
    %v370 = vrcp.pop %v344
    %v371 = vmul.f32 1.0, %v370
    %v372 = vrcp.pop %v345
    %v373 = vmul.f32 1.0, %v372
    %v374 = vrcp.pop %v346
    %v375 = vmul.f32 1.0, %v374
    %v376 = vrcp.pop %v347
    %v377 = vmul.f32 1.0, %v376
    %v378 = vrcp.pop %v348
    %v379 = vmul.f32 1.0, %v378
    %v380 = vrcp.pop %v349
    %v381 = vmul.f32 1.0, %v380
    %382 = vst [vmem:[#allocation2] sm:$0xff] %v351
    %383 = vst [vmem:[#allocation2 + $0x8] sm:$0xff] %v353
    %384 = vst [vmem:[#allocation2 + $0x10] sm:$0xff] %v355
    %385 = vst [vmem:[#allocation2 + $0x18] sm:$0xff] %v357
    %386 = vst [vmem:[#allocation2 + $0x20] sm:$0xff] %v359
    %387 = vst [vmem:[#allocation2 + $0x28] sm:$0xff] %v361
    %388 = vst [vmem:[#allocation2 + $0x30] sm:$0xff] %v363
    %389 = vst [vmem:[#allocation2 + $0x38] sm:$0xff] %v365
    %390 = vst [vmem:[#allocation2 + $0x40] sm:$0xff] %v367
    %391 = vst [vmem:[#allocation2 + $0x48] sm:$0xff] %v369
    %392 = vst [vmem:[#allocation2 + $0x50] sm:$0xff] %v371
    %393 = vst [vmem:[#allocation2 + $0x58] sm:$0xff] %v373
    %394 = vst [vmem:[#allocation2 + $0x60] sm:$0xff] %v375
    %395 = vst [vmem:[#allocation2 + $0x68] sm:$0xff] %v377
    %396 = vst [vmem:[#allocation2 + $0x70] sm:$0xff] %v379
    %397 = vst [vmem:[#allocation2 + $0x78] sm:$0xff] %v381
    // Predicated region
    $region10: #{tpu_custom_call.1} parent=1 // pred_check
      _
    $region11: #{tpu_custom_call.1} parent=1 // pred_check_branch
      %399 = sbr.rel (0) target = $region13
    $region12: #{tpu_custom_call.1} parent=1 // pred_region
      %s401 = ssub.s32 2048, 2048
      %402 = vsyncadd [#allocation3], %s401
      %s403 = sshll.u32 [#allocation2], 4
      %s404 = int_to_ptr.vmem [resolvable:$true] %s403
      %409 = dma.vmem_to_hbm [thread:$0]  %s404, 2048, %s2, [#allocation3], 128, 128, 8
    $region13: #{tpu_custom_call.1} parent=1 // pred_fallthru
      _
    // Predicated region
    $region14: #{tpu_custom_call.1} parent=1 // pred_check
      _
    $region15: #{tpu_custom_call.1} parent=1 // pred_check_branch
      %411 = sbr.rel (0) target = $region17
    $region16: #{tpu_custom_call.1} parent=1 // pred_region
      %412 = dma.done [#allocation3], 2048
    $region17: #{tpu_custom_call.1} parent=1 // pred_fallthru
      _
    %413 = vsyncpa [#allocation3], 1

</llo_original>
